<compile_context>
chip_gen: v5e
topology: v5e:2x2
jax: 0.10.0
libtpu: 0.0.40
codegen_flags: <defaults>
</compile_context>

<pallas_src>
import jax
import jax.numpy as jnp
from jax import lax
from jax.experimental import pallas as pl
from jax.experimental.pallas import tpu as pltpu


def _round_up(n: int, m: int) -> int:
    return ((n + m - 1) // m) * m


def mlp_kernel(x_ref, w1_ref, b1_ref, w2_ref, b2_ref, o_ref):
    # x_ref : [TILE_B, F]  batch tile
    # w1_ref: [H, F]       torch layout, VMEM-resident
    # b1_ref: [H, 1]
    # w2_ref: [H, 1]
    # b2_ref: [1, 1]       scalar in SMEM
    # o_ref : [1, TILE_B]  lane-dense output row
    #
    # Layer 1 on the MXU, computed transposed so batch lands on the lane axis:
    #   h_t[j, b] = sum_f w1[j, f] * x[b, f]
    h_t = lax.dot_general(
        w1_ref[...], x_ref[...],
        dimension_numbers=(((1,), (1,)), ((), ())),   # contract feature axis of both
        preferred_element_type=jnp.float32,
    )                                                 # [H, TILE_B]
    h_t = jnp.maximum(h_t + b1_ref[...], 0.0)         # bias bcast over lanes + ReLU (VPU)

    # Layer 2 (H -> 1) on VPU + sublane reduce (XLU): avoids a degenerate 32x1 MXU matmul
    # and yields a lane-dense [1, TILE_B] row for an unmasked store.
    y = jnp.sum(h_t * w2_ref[...], axis=0, keepdims=True) + b2_ref[0, 0]
    o_ref[...] = y.astype(o_ref.dtype)


def regression_model_forward(x, w1, b1, w2, b2, *, tile_b=512):
    """Forward pass of RegressionModel.

    x : [B, F] float32
    w1: [32, F], b1: [32], w2: [1, 32], b2: [1]   (PyTorch nn.Linear layout)
    returns [B, 1] float32
    """
    B, F = x.shape
    H = w1.shape[0]
    assert w1.shape == (H, F) and b1.shape == (H,)
    assert w2.shape == (1, H) and b2.shape == (1,)
    assert tile_b % 128 == 0, "tile_b must be lane-aligned (multiple of 128)"

    # Batch tile: large enough to amortize ~0.35us per-step overhead; if B is small we
    # fall back to a single full-batch tile (rounded up to a sublane multiple of 8).
    tb = min(tile_b, _round_up(B, 8))
    b_pad = _round_up(B, tb)
    if b_pad != B:
        x = jnp.pad(x, ((0, b_pad - B), (0, 0)))

    b1_col = b1.reshape(H, 1)
    w2_col = w2.reshape(H, 1)
    b2_2d = b2.reshape(1, 1)

    out_row = pl.pallas_call(
        mlp_kernel,
        out_shape=jax.ShapeDtypeStruct((1, b_pad), jnp.float32),
        grid=(b_pad // tb,),
        in_specs=[
            pl.BlockSpec((tb, F), lambda i: (i, 0)),   # x: batch-tiled, double-buffered
            pl.BlockSpec((H, F), lambda i: (0, 0)),    # w1: constant index -> resident
            pl.BlockSpec((H, 1), lambda i: (0, 0)),    # b1: resident
            pl.BlockSpec((H, 1), lambda i: (0, 0)),    # w2: resident
            pl.BlockSpec(memory_space=pltpu.MemorySpace.SMEM),  # b2: scalar in SMEM
        ],
        out_specs=pl.BlockSpec((1, tb), lambda i: (0, i)),      # lane-dense output row
        compiler_params=pltpu.CompilerParams(
            # batch tiles are independent: lets Mosaic shard them across both TCs on v7x
            dimension_semantics=("parallel",),
        ),
    )(x, w1, b1_col, w2_col, b2_2d)

    return out_row[0, :B].reshape(B, 1)


def init_params(key, num_features, hidden=32):
    """Deterministic init mimicking PyTorch nn.Linear default (U[-1/sqrt(fan_in), ...]),
    stored in PyTorch layout: w1 [hidden, F], b1 [hidden], w2 [1, hidden], b2 [1]."""
    k1, k2, k3, k4 = jax.random.split(key, 4)
    lim1 = 1.0 / jnp.sqrt(num_features)
    lim2 = 1.0 / jnp.sqrt(hidden)
    w1 = jax.random.uniform(k1, (hidden, num_features), jnp.float32, -lim1, lim1)
    b1 = jax.random.uniform(k2, (hidden,), jnp.float32, -lim1, lim1)
    w2 = jax.random.uniform(k3, (1, hidden), jnp.float32, -lim2, lim2)
    b2 = jax.random.uniform(k4, (1,), jnp.float32, -lim2, lim2)
    return w1, b1, w2, b2


if __name__ == "__main__":
    key = jax.random.PRNGKey(0)
    k_x, k_p, k_x2 = jax.random.split(key, 3)

    num_features = 13   # Boston housing feature count
    w1, b1, w2, b2 = init_params(k_p, num_features)

    def reference(x):
        h = jnp.maximum(x @ w1.T + b1, 0.0)
        # layer 2 as an explicit f32 multiply + reduce (mirrors the kernel's math)
        return jnp.sum(h * w2, axis=-1, keepdims=True) + b2

    # Small check: single tile (tb == B_padded == 8)
    x_small = jax.random.normal(k_x, (8, num_features), jnp.float32)
    out_small = jax.block_until_ready(regression_model_forward(x_small, w1, b1, w2, b2))
    assert out_small.shape == (8, 1)
    assert jnp.allclose(out_small, reference(x_small), atol=1e-4, rtol=1e-4)

    # Larger check: exercises batch padding (1000 -> 1024) and the 2-step pipelined grid.
    x_big = jax.random.normal(k_x2, (1000, num_features), jnp.float32)
    out_big = jax.block_until_ready(regression_model_forward(x_big, w1, b1, w2, b2))
    assert out_big.shape == (1000, 1)
    assert jnp.allclose(out_big, reference(x_big), atol=1e-4, rtol=1e-4)

    print("KERNEL_OK")
</pallas_src>

<mosaic_0001>
module attributes {stable_mosaic.version = 11 : i64} {
  func.func @mlp_kernel(%arg0: i32, %arg1: memref<8x13xf32, #tpu.memory_space<vmem>>, %arg2: memref<32x13xf32, #tpu.memory_space<vmem>>, %arg3: memref<32x1xf32, #tpu.memory_space<vmem>>, %arg4: memref<32x1xf32, #tpu.memory_space<vmem>>, %arg5: memref<1x1xf32, #tpu.memory_space<smem>>, %arg6: memref<1x8xf32, #tpu.memory_space<vmem>>) attributes {dimension_semantics = [#tpu.dimension_semantics<parallel>], iteration_bounds = array<i64: 1>, scalar_prefetch = 0 : i64, scratch_operands = 0 : i64, tpu.core_type = #tpu.core_type<tc>, window_params = [{transform_indices = @transform_0, window_bounds = array<i64: 8, 13>}, {pipeline_mode = #tpu.pipeline_mode<synchronous>, transform_indices = @transform_1, window_bounds = array<i64: 32, 13>}, {pipeline_mode = #tpu.pipeline_mode<synchronous>, transform_indices = @transform_2, window_bounds = array<i64: 32, 1>}, {pipeline_mode = #tpu.pipeline_mode<synchronous>, transform_indices = @transform_3, window_bounds = array<i64: 32, 1>}, {transform_indices = @transform_4, window_bounds = array<i64: 1, 1>}, {transform_indices = @transform_5, window_bounds = array<i64: 1, 8>}]} {
    %c0 = arith.constant 0 : index
    %c0_0 = arith.constant 0 : index
    %0 = vector.load %arg2[%c0, %c0_0] : memref<32x13xf32, #tpu.memory_space<vmem>>, vector<32x13xf32>
    %c0_1 = arith.constant 0 : index
    %c0_2 = arith.constant 0 : index
    %1 = vector.load %arg1[%c0_1, %c0_2] : memref<8x13xf32, #tpu.memory_space<vmem>>, vector<8x13xf32>
    %cst = arith.constant dense<0.000000e+00> : vector<32x8xf32>
    %2 = tpu.matmul %0, %1, %cst {dimension_numbers = #tpu.dot_dimension_numbers<[1], [1], [0], [0], [0, 0, 1, 0], [], []>} : vector<32x13xf32>, vector<8x13xf32>, vector<32x8xf32> -> vector<32x8xf32>
    %c0_3 = arith.constant 0 : index
    %c0_4 = arith.constant 0 : index
    %3 = vector.load %arg3[%c0_3, %c0_4] : memref<32x1xf32, #tpu.memory_space<vmem>>, vector<32x1xf32>
    %4 = vector.broadcast %3 : vector<32x1xf32> to vector<32x8xf32>
    %5 = arith.addf %2, %4 : vector<32x8xf32>
    %cst_5 = arith.constant 0.000000e+00 : f32
    %6 = vector.broadcast %cst_5 : f32 to vector<32x8xf32>
    %7 = arith.maximumf %5, %6 : vector<32x8xf32>
    %c0_6 = arith.constant 0 : index
    %c0_7 = arith.constant 0 : index
    %8 = vector.load %arg4[%c0_6, %c0_7] : memref<32x1xf32, #tpu.memory_space<vmem>>, vector<32x1xf32>
    %9 = vector.broadcast %8 : vector<32x1xf32> to vector<32x8xf32>
    %10 = arith.mulf %7, %9 : vector<32x8xf32>
    %cst_8 = arith.constant dense<0.000000e+00> : vector<8xf32>
    %11 = vector.multi_reduction <add>, %10, %cst_8 [0] : vector<32x8xf32> to vector<8xf32>
    %12 = vector.shape_cast %11 : vector<8xf32> to vector<1x8xf32>
    %c0_9 = arith.constant 0 : index
    %c0_10 = arith.constant 0 : index
    %13 = memref.load %arg5[%c0_9, %c0_10] : memref<1x1xf32, #tpu.memory_space<smem>>
    %14 = vector.broadcast %13 : f32 to vector<1x8xf32>
    %15 = arith.addf %12, %14 : vector<1x8xf32>
    %c0_11 = arith.constant 0 : index
    %c0_12 = arith.constant 0 : index
    %16 = vector.load %arg6[%c0_11, %c0_12] : memref<1x8xf32, #tpu.memory_space<vmem>>, vector<1x8xf32>
    tpu.vector_store %arg6[%c0_11, %c0_12], %15 {strides = array<i32>} : memref<1x8xf32, #tpu.memory_space<vmem>>, vector<1x8xf32>,
    return
  }
  func.func @transform_0(%arg0: i32) -> (i32, i32) {
    %c0_i32 = arith.constant 0 : i32
    %c0_i32_0 = arith.constant 0 : i32
    return %arg0, %c0_i32 : i32, i32
  }
  func.func @transform_1(%arg0: i32) -> (i32, i32) {
    %c0_i32 = arith.constant 0 : i32
    %c0_i32_0 = arith.constant 0 : i32
    %c0_i32_1 = arith.constant 0 : i32
    return %c0_i32, %c0_i32_0 : i32, i32
  }
  func.func @transform_2(%arg0: i32) -> (i32, i32) {
    %c0_i32 = arith.constant 0 : i32
    %c0_i32_0 = arith.constant 0 : i32
    %c0_i32_1 = arith.constant 0 : i32
    return %c0_i32, %c0_i32_0 : i32, i32
  }
  func.func @transform_3(%arg0: i32) -> (i32, i32) {
    %c0_i32 = arith.constant 0 : i32
    %c0_i32_0 = arith.constant 0 : i32
    %c0_i32_1 = arith.constant 0 : i32
    return %c0_i32, %c0_i32_0 : i32, i32
  }
  func.func @transform_4(%arg0: i32) -> (i32, i32) {
    %c0_i32 = arith.constant 0 : i32
    %c0_i32_0 = arith.constant 0 : i32
    %c0_i32_1 = arith.constant 0 : i32
    return %c0_i32, %c0_i32_0 : i32, i32
  }
  func.func @transform_5(%arg0: i32) -> (i32, i32) {
    %c0_i32 = arith.constant 0 : i32
    %c0_i32_0 = arith.constant 0 : i32
    return %c0_i32, %arg0 : i32, i32
  }
}

</mosaic_0001>

<llo_original>
// kernel: tpu_custom_call.1
$region0: #{tpu_custom_call.1}
  #allocation0 [shape = 'u32[]', space=smem, size = 0x4, offset = 0x4, fixed_abs, tag = 'smem constant byte address 0x4 - core index']
  #allocation1 [shape = 'u32[72,128]{1,0:T(1,128)}', space=vmem, size = 0x9000, scoped, tag = 'internal scratch']
  #allocation2 [shape = 'f32[1,1]{1,0:T(1,128)S(6)}', space=smem, size = 0x200, scoped, tag = 'scoped memory for tpu_custom_call.1']
  %s0 = inlined_call_operand.vmem [shape: f32[8,13], index: 0, kind: input, shape index: {}]
  %s1 = inlined_call_operand.vmem [shape: f32[32,13], index: 1, kind: input, shape index: {}]
  %s2 = inlined_call_operand.vmem [shape: f32[32,1], index: 2, kind: input, shape index: {}]
  %s3 = inlined_call_operand.vmem [shape: f32[32,1], index: 3, kind: input, shape index: {}]
  %s4 = inlined_call_operand.<no memory space> [shape: f32[1,1], index: 4, kind: input, shape index: {}]
  %s5 = inlined_call_operand.hbm [shape: f32[1,8], index: 5, kind: output, shape index: {}]
  %s6 = sld [smem:[#allocation0]]
  $region30: #{tpu_custom_call.1} parent=0
    _
  %s8 = ssub.s32 1, %s6
  %s9 = scalar_select 0, %s8, %s6
  %10 = sst [smem:[#allocation2]] %s4
  $region1: #{tpu_custom_call.1} parent=0
    #allocation3 [shape = 'u8[512]{0}', space=vmem, size = 0x400, scoped, tag = 'output window, operand 0, single buffered']
    #allocation4 [shape = 's32[1]{0}', space=sflag, size = 0x4, scoped, tag = 'scoped memory for tpu_custom_call.1']
    %11 = vsyncpa [#allocation4], 0
    // Predicated region
    $region2: #{tpu_custom_call.1} parent=1 // pred_check
      _
    $region3: #{tpu_custom_call.1} parent=1 // pred_check_branch
      %13 = sbr.rel (0) target = $region5
    $region4: #{tpu_custom_call.1} parent=1 // pred_region
      _
    $region5: #{tpu_custom_call.1} parent=1 // pred_fallthru
      _
    // Predicated region
    $region6: #{tpu_custom_call.1} parent=1 // pred_check
      _
    $region7: #{tpu_custom_call.1} parent=1 // pred_check_branch
      %15 = sbr.rel (0) target = $region9
    $region8: #{tpu_custom_call.1} parent=1 // pred_region
      _
    $region9: #{tpu_custom_call.1} parent=1 // pred_fallthru
      _
    // Predicated region
    $region10: #{tpu_custom_call.1} parent=1 // pred_check
      _
    $region11: #{tpu_custom_call.1} parent=1 // pred_check_branch
      %17 = sbr.rel (0) target = $region13
    $region12: #{tpu_custom_call.1} parent=1 // pred_region
      _
    $region13: #{tpu_custom_call.1} parent=1 // pred_fallthru
      _
    // Predicated region
    $region14: #{tpu_custom_call.1} parent=1 // pred_check
      _
    $region15: #{tpu_custom_call.1} parent=1 // pred_check_branch
      %19 = sbr.rel (0) target = $region17
    $region16: #{tpu_custom_call.1} parent=1 // pred_region
      _
    $region17: #{tpu_custom_call.1} parent=1 // pred_fallthru
      _
    // Predicated region
    $region18: #{tpu_custom_call.1} parent=1 // pred_check
      _
    $region19: #{tpu_custom_call.1} parent=1 // pred_check_branch
      %21 = sbr.rel (0) target = $region21
    $region20: #{tpu_custom_call.1} parent=1 // pred_region
      _
    $region21: #{tpu_custom_call.1} parent=1 // pred_fallthru
      _
    %v22 = vld [vmem:[%s1] sm:$0xff]
    %v23 = vld [vmem:[%s1 + $0x8] sm:$0xff]
    %v24 = vld [vmem:[%s1 + $0x10] sm:$0xff]
    %v25 = vld [vmem:[%s1 + $0x18] sm:$0xff]
    %v26 = vld [vmem:[%s0] sm:$0xff]
    %v27 = vld [vmem:[%s2] sm:$0xff]
    %v28 = vld [vmem:[%s2 + $0x8] sm:$0xff]
    %v29 = vld [vmem:[%s2 + $0x10] sm:$0xff]
    %v30 = vld [vmem:[%s2 + $0x18] sm:$0xff]
    %32 = vset.pattern.permute.xlu0 0
    %33 = vperm.xlu0 %32, %v27
    %v34 = vpop.permute.xlu0 %33
    %37 = vset.pattern.permute.xlu0 0
    %38 = vperm.xlu0 %37, %v28
    %v39 = vpop.permute.xlu0 %38
    %42 = vset.pattern.permute.xlu0 0
    %43 = vperm.xlu0 %42, %v29
    %v44 = vpop.permute.xlu0 %43
    %47 = vset.pattern.permute.xlu0 0
    %48 = vperm.xlu0 %47, %v30
    %v49 = vpop.permute.xlu0 %48
    %vm51 = vcmask 105472
    %v53 = vsel %vm51, %v22, 0
    %v56 = vsel %vm51, %v23, 0
    %v59 = vsel %vm51, %v24, 0
    %v62 = vsel %vm51, %v25, 0
    %v65 = vsel %vm51, %v26, 0
    %67 = vmatpush.xpose.msra.mxu0 0.0
    %68 = vmatpush.xpose.msra.mxu0 0.0
    %69 = vmatpush.xpose.msra.mxu0 0.0
    %70 = vmatpush.xpose.msra.mxu0 0.0
    %71 = vmatpush.xpose.msra.mxu0 0.0
    %72 = vmatpush.xpose.msra.mxu0 0.0
    %73 = vmatpush.xpose.msra.mxu0 0.0
    %74 = vmatpush.xpose.msra.mxu0 0.0
    %75 = vmatpush.xpose.msra.mxu0 0.0
    %76 = vmatpush.xpose.msra.mxu0 0.0
    %77 = vmatpush.xpose.msra.mxu0 0.0
    %78 = vmatpush.xpose.msra.mxu0 0.0
    %79 = vmatpush.xpose.msra.mxu0 0.0
    %80 = vmatpush.xpose.msra.mxu0 0.0
    %81 = vmatpush.xpose.msra.mxu0 0.0
    %82 = vmatpush.xpose.msra.mxu0 %v65
    %83 = vmatmul.f32.gmra.mxu0 %v53
    %v84 = vpop.f32.mrf.mxu0
    %v85 = vadd.f32 %v34, %v84
    %86 = vmatmul.f32.gmra.mxu0 %v56
    %v87 = vpop.f32.mrf.mxu0
    %v88 = vadd.f32 %v39, %v87
    %89 = vmatmul.f32.gmra.mxu0 %v59
    %v90 = vpop.f32.mrf.mxu0
    %v91 = vadd.f32 %v44, %v90
    %92 = vmatmul.f32.gmra.mxu0 %v62
    %v93 = vpop.f32.mrf.mxu0
    %v94 = vadd.f32 %v49, %v93
    %95 = vdwg.mxu0
    %v96 = vmax.f32 %v85, 0.0
    %v97 = vmax.f32 %v88, 0.0
    %v98 = vmax.f32 %v91, 0.0
    %v99 = vmax.f32 %v94, 0.0
    %v100 = vld [vmem:[%s3] sm:$0xff]
    %v101 = vld [vmem:[%s3 + $0x8] sm:$0xff]
    %v102 = vld [vmem:[%s3 + $0x10] sm:$0xff]
    %v103 = vld [vmem:[%s3 + $0x18] sm:$0xff]
    %105 = vset.pattern.permute.xlu0 0
    %106 = vperm.xlu0 %105, %v100
    %v107 = vpop.permute.xlu0 %106
    %110 = vset.pattern.permute.xlu0 0
    %111 = vperm.xlu0 %110, %v101
    %v112 = vpop.permute.xlu0 %111
    %115 = vset.pattern.permute.xlu0 0
    %116 = vperm.xlu0 %115, %v102
    %v117 = vpop.permute.xlu0 %116
    %120 = vset.pattern.permute.xlu0 0
    %121 = vperm.xlu0 %120, %v103
    %v122 = vpop.permute.xlu0 %121
    %v124 = vmul.f32 %v96, %v107
    %v125 = vmul.f32 %v97, %v112
    %v126 = vmul.f32 %v98, %v117
    %v127 = vmul.f32 %v99, %v122
    %vm128 = vcmask 64512
    %v129 = vsel %vm128, %v124, 0.0
    %v130 = vsel %vm128, %v125, 0.0
    %v131 = vadd.f32 %v129, %v130
    %v132 = vsel %vm128, %v126, 0.0
    %v133 = vadd.f32 %v131, %v132
    %v134 = vsel %vm128, %v127, 0.0
    %v135 = vadd.f32 %v133, %v134
    %v136 = vrot.slane %v135, 4
    %v137 = vadd.f32 %v135, %v136
    %v138 = vrot.slane %v137, 2
    %v139 = vadd.f32 %v137, %v138
    %v140 = vrot.slane %v139, 1
    %v141 = vadd.f32 %v139, %v140
    %s142 = sld [smem:[#allocation2]]
    %v143 = vstv %s142
    %v144 = vadd.f32 %v141, %v143
    %vm145 = vcmask 57344
    %146 = vst.msk [vmem:[#allocation3] sm:$0x1] %vm145, %v144
    // Predicated region
    $region22: #{tpu_custom_call.1} parent=1 // pred_check
      _
    $region23: #{tpu_custom_call.1} parent=1 // pred_check_branch
      %148 = sbr.rel (0) target = $region25
    $region24: #{tpu_custom_call.1} parent=1 // pred_region
      %150 = vsyncadd [#allocation4], 0
      %s152 = sshll.u32 [#allocation3], 4
      %s153 = int_to_ptr.vmem [resolvable:$true] %s152
      %s154 = sshll.u32 %s5, 4
      %s155 = int_to_ptr.hbm [resolvable:$true] %s154
      %157 = dma.vmem_to_hbm [thread:$0]  %s153, 16, %s155, [#allocation4]
    $region25: #{tpu_custom_call.1} parent=1 // pred_fallthru
      _
    // Predicated region
    $region26: #{tpu_custom_call.1} parent=1 // pred_check
      _
    $region27: #{tpu_custom_call.1} parent=1 // pred_check_branch
      %159 = sbr.rel (0) target = $region29
    $region28: #{tpu_custom_call.1} parent=1 // pred_region
      %161 = dma.done [#allocation4], 16
    $region29: #{tpu_custom_call.1} parent=1 // pred_fallthru
      _
    %162 = vsyncpa [#allocation4], 1

</llo_original>
